<compile_context>
chip_gen: v6e
topology: v6e:2x2x1
jax: 0.10.0
libtpu: 0.0.40
codegen_flags: <defaults>
</compile_context>

<pallas_src>
import numpy as np
import jax
import jax.numpy as jnp
from jax.experimental import pallas as pl
from jax.experimental.pallas import tpu as pltpu


def make_sinusoid_table(n_position: int, d_hid: int) -> jnp.ndarray:
    """Deterministic sinusoid table, identical to the PyTorch buffer: (1, n_position, d_hid)."""
    pos = np.arange(n_position, dtype=np.float64)[:, None]                 # (n_position, 1)
    hid = np.arange(d_hid, dtype=np.int64)[None, :]                        # (1, d_hid)
    angle = pos / np.power(10000.0, 2 * (hid // 2) / d_hid)                # (n_position, d_hid)
    table = np.empty_like(angle)
    table[:, 0::2] = np.sin(angle[:, 0::2])
    table[:, 1::2] = np.cos(angle[:, 1::2])
    return jnp.asarray(table[None, ...], dtype=jnp.float32)                # (1, n_position, d_hid)


def _pos_enc_kernel(x_ref, pe_ref, o_ref):
    # (TB, TS, TD) + (1, TS, TD): broadcast over the folded batch dim, add in the
    # promoted dtype, cast only on the store.
    o_ref[...] = (x_ref[...] + pe_ref[...]).astype(o_ref.dtype)


# Conservative: fits every generation's default scoped VMEM (16 MiB on v5e) with
# headroom, no vmem_limit_bytes override needed, far below v7x's 64 MiB physical.
_DEFAULT_VMEM_BUDGET = 12 * 1024 * 1024


def _sublane_multiple(dtype) -> int:
    """Packed-sublane multiple: 8 for 32-bit, 16 for bf16/f16, 32 for int8/fp8."""
    bits = jnp.dtype(dtype).itemsize * 8
    return max(8, 256 // bits)


def _choose_tiles(B, S, D, x_bytes, pe_bytes, sub, budget):
    """Pick (TB, TS, TD) under `budget` bytes of double-buffered VMEM.

    Preference order (perf review): full hidden dim (contiguous DMA, lane-dense
    stores)  ->  biggest sequence tile  ->  fold batches into the block.
    """
    stream_bytes = 2 * x_bytes + pe_bytes        # x tile + out tile (x dtype) + pe tile per element
    dbl = 2                                      # double buffering

    # 1) hidden tile: prefer the full D.
    ts_min = S if S < sub else sub
    max_td = budget // (dbl * ts_min * stream_bytes)
    if max_td >= D:
        TD = D
    else:
        TD = min(D, max(128, (max_td // 128) * 128))

    # 2) sequence tile: as large as fits (multiple of `sub`, or the full S).
    max_ts = budget // (dbl * TD * stream_bytes)
    if max_ts >= S:
        TS = S
    else:
        TS = min(S, max(sub, (max_ts // sub) * sub))

    # 3) batch fold: only once a full (S, D) slab per batch fits.
    TB = 1
    if TS == S and TD == D:
        per_batch = dbl * 2 * S * D * x_bytes
        fixed = dbl * S * D * pe_bytes
        max_tb = max(1, (budget - fixed) // per_batch)
        TB = int(min(B, max_tb))

    return TB, TS, TD


def positional_encoding(x: jnp.ndarray,
                        pos_table: jnp.ndarray,
                        *,
                        vmem_budget_bytes: int = _DEFAULT_VMEM_BUDGET,
                        donate_x: bool = False) -> jnp.ndarray:
    """x: (B, S, D); pos_table: (1, n_position, D) with n_position >= S."""
    B, S, D = x.shape
    n_position = pos_table.shape[1]
    assert pos_table.shape[0] == 1 and pos_table.shape[2] == D and n_position >= S

    x_bytes = jnp.dtype(x.dtype).itemsize
    pe_bytes = jnp.dtype(pos_table.dtype).itemsize
    sub = max(_sublane_multiple(x.dtype), _sublane_multiple(pos_table.dtype))

    TB, TS, TD = _choose_tiles(B, S, D, x_bytes, pe_bytes, sub, vmem_budget_bytes)

    pe = pos_table
    if TS % sub != 0 and TS != n_position:
        # TS equals x's (ragged) full sequence length but not the table's n_position:
        # slice the table once in the wrapper so TS is the full extent of *both*
        # operands, keeping every block shape legal for any dtype packing.
        pe = jax.lax.slice(pos_table, (0, 0, 0), (1, S, D))

    grid = (pl.cdiv(S, TS), pl.cdiv(D, TD), pl.cdiv(B, TB))

    grid_spec = pltpu.PrefetchScalarGridSpec(
        num_scalar_prefetch=0,
        # Batch (if any remains) innermost: the PE block index (0, s, d) is unchanged
        # across batch steps, so each PE tile is DMA'd once and reused.
        grid=grid,
        in_specs=[
            pl.BlockSpec((TB, TS, TD), lambda s, d, b: (b, s, d)),   # x
            pl.BlockSpec((1, TS, TD), lambda s, d, b: (0, s, d)),    # pos_table; ':S' via grid extent
        ],
        out_specs=pl.BlockSpec((TB, TS, TD), lambda s, d, b: (b, s, d)),
    )

    return pl.pallas_call(
        _pos_enc_kernel,
        out_shape=jax.ShapeDtypeStruct((B, S, D), x.dtype),
        grid_spec=grid_spec,
        compiler_params=pltpu.CompilerParams(
            # No accumulator anywhere: every axis is independent, so let v7x's two
            # TensorCores shard any of them (no-op on single-TC v5e/v6e).
            dimension_semantics=("parallel", "parallel", "parallel"),
        ),
        input_output_aliases=({0: 0} if donate_x else {}),
    )(x, pe)


if __name__ == "__main__":
    # Demo shape consistent with the module: batch=2, seq=8, hidden=32, n_position=200.
    B, S, D = 2, 8, 32
    n_position = 200

    key = jax.random.PRNGKey(0)
    x = jax.random.normal(key, (B, S, D), dtype=jnp.float32)
    pos_table = make_sinusoid_table(n_position, D)

    out = jax.block_until_ready(positional_encoding(x, pos_table))
    assert out.shape == (B, S, D)
    ref = x + pos_table[:, :S, :]
    np.testing.assert_allclose(np.asarray(out), np.asarray(ref), rtol=1e-6, atol=1e-6)

    # Tiled path: an artificially tiny budget forces a split hidden dim (TD=128),
    # small sequence tiles and TB=1 -> exercises the multi-axis grid and PE reuse.
    B2, S2, D2, n_pos2 = 2, 96, 256, 128
    x2 = jax.random.normal(jax.random.PRNGKey(0), (B2, S2, D2), dtype=jnp.float32)
    t2 = make_sinusoid_table(n_pos2, D2)
    out2 = jax.block_until_ready(
        positional_encoding(x2, t2, vmem_budget_bytes=20_000))
    np.testing.assert_allclose(np.asarray(out2), np.asarray(x2 + t2[:, :S2, :]),
                               rtol=1e-6, atol=1e-6)

    # bf16 path: sublane multiple 16, ragged full-S tile (24 % 16 != 0) -> table is
    # sliced in the wrapper; the add runs in f32 and is cast to bf16 on the store.
    B3, S3, D3 = 2, 24, 128
    x3 = jax.random.normal(jax.random.PRNGKey(0), (B3, S3, D3), dtype=jnp.bfloat16)
    t3 = make_sinusoid_table(n_position, D3)
    out3 = jax.block_until_ready(positional_encoding(x3, t3))
    ref3 = (x3.astype(jnp.float32) + t3[:, :S3, :]).astype(jnp.bfloat16)
    np.testing.assert_allclose(np.asarray(out3.astype(jnp.float32)),
                               np.asarray(ref3.astype(jnp.float32)),
                               rtol=2e-2, atol=2e-2)

    print("KERNEL_OK")
</pallas_src>

<mosaic_0001>
module attributes {stable_mosaic.version = 11 : i64} {
  func.func @_pos_enc_kernel(%arg0: i32, %arg1: i32, %arg2: i32, %arg3: memref<2x8x32xf32, #tpu.memory_space<vmem>>, %arg4: memref<1x8x32xf32, #tpu.memory_space<vmem>>, %arg5: memref<2x8x32xf32, #tpu.memory_space<vmem>>) attributes {dimension_semantics = [#tpu.dimension_semantics<parallel>, #tpu.dimension_semantics<parallel>, #tpu.dimension_semantics<parallel>], iteration_bounds = array<i64: 1, 1, 1>, scalar_prefetch = 0 : i64, scratch_operands = 0 : i64, tpu.core_type = #tpu.core_type<tc>, window_params = [{transform_indices = @transform_0, window_bounds = array<i64: 2, 8, 32>}, {transform_indices = @transform_1, window_bounds = array<i64: 1, 8, 32>}, {transform_indices = @transform_2, window_bounds = array<i64: 2, 8, 32>}]} {
    %c0 = arith.constant 0 : index
    %c0_0 = arith.constant 0 : index
    %c0_1 = arith.constant 0 : index
    %0 = vector.load %arg3[%c0, %c0_0, %c0_1] : memref<2x8x32xf32, #tpu.memory_space<vmem>>, vector<2x8x32xf32>
    %c0_2 = arith.constant 0 : index
    %c0_3 = arith.constant 0 : index
    %c0_4 = arith.constant 0 : index
    %1 = vector.load %arg4[%c0_2, %c0_3, %c0_4] : memref<1x8x32xf32, #tpu.memory_space<vmem>>, vector<1x8x32xf32>
    %2 = vector.broadcast %1 : vector<1x8x32xf32> to vector<2x8x32xf32>
    %3 = arith.addf %0, %2 : vector<2x8x32xf32>
    %c0_5 = arith.constant 0 : index
    %c0_6 = arith.constant 0 : index
    %c0_7 = arith.constant 0 : index
    %4 = vector.load %arg5[%c0_5, %c0_6, %c0_7] : memref<2x8x32xf32, #tpu.memory_space<vmem>>, vector<2x8x32xf32>
    tpu.vector_store %arg5[%c0_5, %c0_6, %c0_7], %3 {strides = array<i32>} : memref<2x8x32xf32, #tpu.memory_space<vmem>>, vector<2x8x32xf32>,
    return
  }
  func.func @transform_0(%arg0: i32, %arg1: i32, %arg2: i32) -> (i32, i32, i32) {
    %c0_i32 = arith.constant 0 : i32
    return %arg2, %arg0, %arg1 : i32, i32, i32
  }
  func.func @transform_1(%arg0: i32, %arg1: i32, %arg2: i32) -> (i32, i32, i32) {
    %c0_i32 = arith.constant 0 : i32
    %c0_i32_0 = arith.constant 0 : i32
    return %c0_i32, %arg0, %arg1 : i32, i32, i32
  }
  func.func @transform_2(%arg0: i32, %arg1: i32, %arg2: i32) -> (i32, i32, i32) {
    %c0_i32 = arith.constant 0 : i32
    return %arg2, %arg0, %arg1 : i32, i32, i32
  }
}

</mosaic_0001>

<llo_original>
// kernel: tpu_custom_call.1
$region0: #{tpu_custom_call.1}
  #allocation0 [shape = 'u32[]', space=smem, size = 0x4, offset = 0x4, fixed_abs, tag = 'smem constant byte address 0x4 - core index']
  #allocation1 [shape = 'u32[144,128]{1,0:T(1,128)}', space=vmem, size = 0x12000, scoped, tag = 'internal scratch']
  %s0 = inlined_call_operand.vmem [shape: f32[2,8,32], index: 0, kind: input, shape index: {}]
  %s1 = inlined_call_operand.vmem [shape: f32[1,200,32], index: 1, kind: input, shape index: {}]
  %s2 = inlined_call_operand.hbm [shape: f32[2,8,32], index: 2, kind: output, shape index: {}]
  %s3 = sld [smem:[#allocation0]]
  $region18: #{tpu_custom_call.1} parent=0
    _
  %s5 = ssub.s32 1, %s3
  %s6 = scalar_select 0, %s5, %s3
  $region1: #{tpu_custom_call.1} parent=0
    #allocation2 [shape = 'u8[8192]{0}', space=vmem, size = 0x2000, scoped, tag = 'output window, operand 0, single buffered']
    #allocation3 [shape = 's32[1]{0}', space=sflag, size = 0x4, scoped, tag = 'scoped memory for tpu_custom_call.1']
    %7 = vsyncpa [#allocation3], 0
    // Predicated region
    $region2: #{tpu_custom_call.1} parent=1 // pred_check
      _
    $region3: #{tpu_custom_call.1} parent=1 // pred_check_branch
      %9 = sbr.rel (0) target = $region5
    $region4: #{tpu_custom_call.1} parent=1 // pred_region
      _
    $region5: #{tpu_custom_call.1} parent=1 // pred_fallthru
      _
    // Predicated region
    $region6: #{tpu_custom_call.1} parent=1 // pred_check
      _
    $region7: #{tpu_custom_call.1} parent=1 // pred_check_branch
      %11 = sbr.rel (0) target = $region9
    $region8: #{tpu_custom_call.1} parent=1 // pred_region
      _
    $region9: #{tpu_custom_call.1} parent=1 // pred_fallthru
      _
    %v12 = vld [vmem:[%s0] sm:$0xff]
    %v13 = vld [vmem:[%s0 + $0x8] sm:$0xff]
    %v14 = vld [vmem:[%s1] sm:$0xff]
    %v15 = vadd.f32 %v12, %v14
    %v16 = vadd.f32 %v13, %v14
    %vm17 = vcmask 261120
    %18 = vst.msk [vmem:[#allocation2] sm:$0xff] %vm17, %v15
    %19 = vst.msk [vmem:[#allocation2 + $0x8] sm:$0xff] %vm17, %v16
    // Predicated region
    $region10: #{tpu_custom_call.1} parent=1 // pred_check
      _
    $region11: #{tpu_custom_call.1} parent=1 // pred_check_branch
      %21 = sbr.rel (0) target = $region13
    $region12: #{tpu_custom_call.1} parent=1 // pred_region
      %s23 = ssub.s32 256, 256
      %24 = vsyncadd [#allocation3], %s23
      %s25 = sshll.u32 [#allocation2], 4
      %s26 = int_to_ptr.vmem [resolvable:$true] %s25
      %31 = dma.vmem_to_hbm [thread:$0]  %s26, 256, %s2, [#allocation3], 128, 128, 8
    $region13: #{tpu_custom_call.1} parent=1 // pred_fallthru
      _
    // Predicated region
    $region14: #{tpu_custom_call.1} parent=1 // pred_check
      _
    $region15: #{tpu_custom_call.1} parent=1 // pred_check_branch
      %33 = sbr.rel (0) target = $region17
    $region16: #{tpu_custom_call.1} parent=1 // pred_region
      %34 = dma.done [#allocation3], 256
    $region17: #{tpu_custom_call.1} parent=1 // pred_fallthru
      _
    %35 = vsyncpa [#allocation3], 1

</llo_original>
